<compile_context>
chip_gen: v7x
topology: tpu7x:2x2x1
jax: 0.10.0
libtpu: 0.0.40
codegen_flags: <defaults>
</compile_context>

<pallas_src>
import jax
import jax.numpy as jnp
from jax.experimental import pallas as pl
from jax.experimental.pallas import tpu as pltpu


def _add_kernel(a_ref, b_ref, o_ref):
    # Elementwise hot path: whole VMEM tile on the VPU.
    o_ref[...] = a_ref[...] + b_ref[...]


def _tpu_generation():
    """Best-effort TPU generation (5, 6, 7, ...); 0 if unknown."""
    try:
        kind = jax.devices()[0].device_kind.lower()
    except Exception:
        return 0
    for g in (7, 6, 5, 4, 3, 2):
        if (f"v{g}" in kind) or kind.startswith(f"tpu{g}") or (f"tpu {g}" in kind):
            return g
    return 0


def _choose_cols(n, sublane):
    """Widest lane-dense last dim (multiple of 128) dividing n that also gives
    at least `sublane` rows (fully packed vregs).  Falls back to the widest
    divisor of n; returns 0 if n is not a multiple of 128."""
    widest_divisor = 0
    for c in (8192, 4096, 2048, 1024, 512, 256, 128):
        if n % c == 0:
            if n // c >= sublane:
                return c
            if widest_divisor == 0:
                widest_divisor = c
    return widest_divisor


def _choose_tile_rows(rows, cols, itemsize, sublane, target_bytes, two_cores):
    """Row-tile sized to ~target_bytes per operand.  The grid uses cdiv, so the
    tile does NOT need to divide `rows` (partial last block is masked)."""
    row_bytes = cols * itemsize
    max_rows = max(sublane, (target_bytes // row_bytes) // sublane * sublane)
    if rows <= max_rows:
        tile_r = rows            # single full-dim block (always layout-legal)
    else:
        tile_r = max_rows        # multiple of sublane; cdiv grid masks the tail
    if two_cores and rows >= 2 * sublane and rows * row_bytes > (512 << 10):
        # v7x megacore: guarantee >= 2 grid steps so both TensorCores stream HBM.
        half = ((rows + 1) // 2 + sublane - 1) // sublane * sublane
        tile_r = min(tile_r, max(sublane, half))
    return tile_r


def _pallas_add_2d(x2, y2, itemsize, sublane):
    rows, cols = x2.shape
    gen = _tpu_generation()
    two_cores = gen >= 7
    # HBM-roofline tile target per operand (per generation).
    target_bytes = {5: 2 << 20, 6: 4 << 20, 7: 4 << 20}.get(gen, 2 << 20)

    tile_r = _choose_tile_rows(rows, cols, itemsize, sublane, target_bytes, two_cores)
    grid_r = pl.cdiv(rows, tile_r)
    tile_bytes = tile_r * cols * itemsize
    # 3 operands x 2 pipeline buffers x tile_bytes, plus slack.  Capped at
    # 48 MiB (safe below v7x's 64 MiB physical VMEM; v5e/v6e have 128 MiB).
    vmem_limit = int(min(48 << 20, max(32 << 20, 8 * tile_bytes)))

    cost = pl.CostEstimate(
        flops=rows * cols,
        transcendentals=0,
        bytes_accessed=3 * rows * cols * itemsize,
    )
    return pl.pallas_call(
        _add_kernel,
        out_shape=jax.ShapeDtypeStruct((rows, cols), x2.dtype),
        grid=(grid_r,),
        in_specs=[
            pl.BlockSpec((tile_r, cols), lambda i: (i, 0)),
            pl.BlockSpec((tile_r, cols), lambda i: (i, 0)),
        ],
        out_specs=pl.BlockSpec((tile_r, cols), lambda i: (i, 0)),
        compiler_params=pltpu.CompilerParams(
            # Independent row tiles -> shard across both TCs on v7x megacore.
            dimension_semantics=("parallel",),
            vmem_limit_bytes=vmem_limit,
        ),
        cost_estimate=cost,
    )(x2, y2)


def func_module_add(x, y):
    """FuncModule(torch.add).forward(x, y) == x + y (same shape/dtype)."""
    assert x.shape == y.shape and x.dtype == y.dtype
    orig_shape = x.shape
    n = int(x.size)
    if n == 0:
        return x + y

    itemsize = jnp.dtype(x.dtype).itemsize
    # Sublane packing: f32 -> 8, bf16 -> 16, int8 -> 32.
    sublane = max(8, 32 // itemsize)

    xf = x.reshape(-1)
    yf = y.reshape(-1)

    cols = _choose_cols(n, sublane)
    if cols:
        rows = n // cols
        out = _pallas_add_2d(
            xf.reshape(rows, cols), yf.reshape(rows, cols), itemsize, sublane
        ).reshape(-1)
    else:
        # Ragged n (not a multiple of 128): Pallas on the aligned prefix and a
        # tiny (<128-element) XLA add for the tail.  Avoids padding/copying the
        # full operands and re-slicing the full output.
        n_main = (n // 128) * 128
        if n_main:
            c_main = _choose_cols(n_main, sublane)
            r_main = n_main // c_main
            main = _pallas_add_2d(
                xf[:n_main].reshape(r_main, c_main),
                yf[:n_main].reshape(r_main, c_main),
                itemsize, sublane,
            ).reshape(-1)
            tail = xf[n_main:] + yf[n_main:]
            out = jnp.concatenate([main, tail])
        else:
            # n < 128: too small to tile usefully; plain add.
            out = xf + yf
    return out.reshape(orig_shape)


if __name__ == "__main__":
    key = jax.random.PRNGKey(0)
    k1, k2 = jax.random.split(key)
    # Shapes consistent with the NCHW test inputs used with FuncModule.
    x = jax.random.normal(k1, (2, 4, 16, 16), dtype=jnp.float32)
    y = jax.random.normal(k2, (2, 4, 16, 16), dtype=jnp.float32)

    out = func_module_add(x, y)
    out = jax.block_until_ready(out)

    # Correctness check against the pure-JAX reference of f = add.
    ref = x + y
    assert out.shape == ref.shape and out.dtype == ref.dtype
    assert jnp.max(jnp.abs(out - ref)) < 1e-6

    print("KERNEL_OK")
</pallas_src>

<mosaic_0001>
module attributes {stable_mosaic.version = 11 : i64} {
  func.func @_add_kernel(%arg0: i32, %arg1: memref<8x256xf32, #tpu.memory_space<vmem>>, %arg2: memref<8x256xf32, #tpu.memory_space<vmem>>, %arg3: memref<8x256xf32, #tpu.memory_space<vmem>>) attributes {dimension_semantics = [#tpu.dimension_semantics<parallel>], iteration_bounds = array<i64: 1>, scalar_prefetch = 0 : i64, scratch_operands = 0 : i64, tpu.core_type = #tpu.core_type<tc>, window_params = [{transform_indices = @transform_0, window_bounds = array<i64: 8, 256>}, {transform_indices = @transform_1, window_bounds = array<i64: 8, 256>}, {transform_indices = @transform_2, window_bounds = array<i64: 8, 256>}]} {
    %c0 = arith.constant 0 : index
    %c0_0 = arith.constant 0 : index
    %0 = vector.load %arg1[%c0, %c0_0] : memref<8x256xf32, #tpu.memory_space<vmem>>, vector<8x256xf32>
    %c0_1 = arith.constant 0 : index
    %c0_2 = arith.constant 0 : index
    %1 = vector.load %arg2[%c0_1, %c0_2] : memref<8x256xf32, #tpu.memory_space<vmem>>, vector<8x256xf32>
    %2 = arith.addf %0, %1 : vector<8x256xf32>
    %c0_3 = arith.constant 0 : index
    %c0_4 = arith.constant 0 : index
    %3 = vector.load %arg3[%c0_3, %c0_4] : memref<8x256xf32, #tpu.memory_space<vmem>>, vector<8x256xf32>
    tpu.vector_store %arg3[%c0_3, %c0_4], %2 {strides = array<i32>} : memref<8x256xf32, #tpu.memory_space<vmem>>, vector<8x256xf32>,
    return
  }
  func.func @transform_0(%arg0: i32) -> (i32, i32) {
    %c0_i32 = arith.constant 0 : i32
    %c0_i32_0 = arith.constant 0 : i32
    return %arg0, %c0_i32 : i32, i32
  }
  func.func @transform_1(%arg0: i32) -> (i32, i32) {
    %c0_i32 = arith.constant 0 : i32
    %c0_i32_0 = arith.constant 0 : i32
    return %arg0, %c0_i32 : i32, i32
  }
  func.func @transform_2(%arg0: i32) -> (i32, i32) {
    %c0_i32 = arith.constant 0 : i32
    %c0_i32_0 = arith.constant 0 : i32
    return %arg0, %c0_i32 : i32, i32
  }
}

</mosaic_0001>

<llo_original>
// kernel: tpu_custom_call.1
$region0: #{tpu_custom_call.1}
  #allocation0 [shape = 'u32[]', space=smem, size = 0x4, offset = 0x4, fixed_abs, tag = 'smem constant byte address 0x4 - core index']
  #allocation1 [shape = 'u32[144,128]{1,0:T(1,128)}', space=vmem, size = 0x12000, scoped, tag = 'internal scratch']
  %s0 = inlined_call_operand.hbm [shape: f32[8,256], index: 0, kind: input, shape index: {}]
  %s1 = inlined_call_operand.hbm [shape: f32[8,256], index: 1, kind: input, shape index: {}]
  %s2 = inlined_call_operand.hbm [shape: f32[8,256], index: 2, kind: output, shape index: {}]
  %s3 = sld [smem:[#allocation0]]
  $region26: #{tpu_custom_call.1} parent=0
    _
  %s5 = ssub.s32 1, %s3
  %s6 = scalar_select 0, %s5, %s3
  $region1: #{tpu_custom_call.1} parent=0
    #allocation2 [shape = 'u8[8192]{0}', space=vmem, size = 0x2000, scoped, tag = 'input window, operand 0, single buffered']
    #allocation3 [shape = 's32[1]{0}', space=sflag, size = 0x4, scoped, tag = 'scoped memory for tpu_custom_call.1']
    #allocation4 [shape = 's32[1]{0}', space=sflag, size = 0x4, scoped, tag = 'scoped memory for tpu_custom_call.1']
    #allocation5 [shape = 'u8[8192]{0}', space=vmem, size = 0x2000, scoped, tag = 'input window, operand 1, single buffered']
    #allocation6 [shape = 's32[1]{0}', space=sflag, size = 0x4, scoped, tag = 'scoped memory for tpu_custom_call.1']
    #allocation7 [shape = 'u8[8192]{0}', space=vmem, size = 0x2000, scoped, tag = 'output window, operand 0, single buffered']
    %7 = vsyncpa [#allocation3], 0
    %8 = vsyncpa [#allocation6], 0
    %9 = vsyncpa [#allocation4], 0
    // Predicated region
    $region2: #{tpu_custom_call.1} parent=1 // pred_check
      _
    $region3: #{tpu_custom_call.1} parent=1 // pred_check_branch
      %11 = sbr.rel (0) target = $region5
    $region4: #{tpu_custom_call.1} parent=1 // pred_region
      %s13 = ssub.s32 256, 256
      %14 = vsyncadd [#allocation3], %s13
      %s16 = sshll.u32 [#allocation2], 4
      %s17 = int_to_ptr.vmem [resolvable:$true] %s16
      %19 = dma.hbm_to_vmem [thread:$0]  %s0, 256, %s17, [#allocation3]
    $region5: #{tpu_custom_call.1} parent=1 // pred_fallthru
      _
    // Predicated region
    $region6: #{tpu_custom_call.1} parent=1 // pred_check
      _
    $region7: #{tpu_custom_call.1} parent=1 // pred_check_branch
      %21 = sbr.rel (0) target = $region9
    $region8: #{tpu_custom_call.1} parent=1 // pred_region
      %s23 = ssub.s32 256, 256
      %24 = vsyncadd [#allocation6], %s23
      %s26 = sshll.u32 [#allocation5], 4
      %s27 = int_to_ptr.vmem [resolvable:$true] %s26
      %29 = dma.hbm_to_vmem [thread:$0]  %s1, 256, %s27, [#allocation6]
    $region9: #{tpu_custom_call.1} parent=1 // pred_fallthru
      _
    // Predicated region
    $region10: #{tpu_custom_call.1} parent=1 // pred_check
      _
    $region11: #{tpu_custom_call.1} parent=1 // pred_check_branch
      %31 = sbr.rel (0) target = $region13
    $region12: #{tpu_custom_call.1} parent=1 // pred_region
      %32 = dma.done [#allocation3], 256
    $region13: #{tpu_custom_call.1} parent=1 // pred_fallthru
      _
    // Predicated region
    $region14: #{tpu_custom_call.1} parent=1 // pred_check
      _
    $region15: #{tpu_custom_call.1} parent=1 // pred_check_branch
      %34 = sbr.rel (0) target = $region17
    $region16: #{tpu_custom_call.1} parent=1 // pred_region
      %35 = dma.done [#allocation6], 256
    $region17: #{tpu_custom_call.1} parent=1 // pred_fallthru
      _
    %v36 = vld [vmem:[#allocation2] sm:$0xff]
    %v37 = vld [vmem:[#allocation2 + $0x8] sm:$0xff]
    %v38 = vld [vmem:[#allocation5] sm:$0xff]
    %v39 = vld [vmem:[#allocation5 + $0x8] sm:$0xff]
    %v40 = vadd.f32 %v36, %v38
    %v41 = vadd.f32 %v37, %v39
    %42 = vst [vmem:[#allocation7] sm:$0xff] %v40
    %43 = vst [vmem:[#allocation7 + $0x8] sm:$0xff] %v41
    // Predicated region
    $region18: #{tpu_custom_call.1} parent=1 // pred_check
      _
    $region19: #{tpu_custom_call.1} parent=1 // pred_check_branch
      %45 = sbr.rel (0) target = $region21
    $region20: #{tpu_custom_call.1} parent=1 // pred_region
      %s47 = ssub.s32 256, 256
      %48 = vsyncadd [#allocation4], %s47
      %s50 = sshll.u32 [#allocation7], 4
      %s51 = int_to_ptr.vmem [resolvable:$true] %s50
      %53 = dma.vmem_to_hbm [thread:$0]  %s51, 256, %s2, [#allocation4]
    $region21: #{tpu_custom_call.1} parent=1 // pred_fallthru
      _
    // Predicated region
    $region22: #{tpu_custom_call.1} parent=1 // pred_check
      _
    $region23: #{tpu_custom_call.1} parent=1 // pred_check_branch
      %55 = sbr.rel (0) target = $region25
    $region24: #{tpu_custom_call.1} parent=1 // pred_region
      %56 = dma.done [#allocation4], 256
    $region25: #{tpu_custom_call.1} parent=1 // pred_fallthru
      _
    %57 = vsyncpa [#allocation3], 1
    %58 = vsyncpa [#allocation6], 1
    %59 = vsyncpa [#allocation4], 1

</llo_original>
